<compile_context>
chip_gen: v7x
topology: tpu7x:2x2x1
jax: 0.10.0
libtpu: 0.0.40
codegen_flags: <defaults>
</compile_context>

<pallas_src>
import jax
import jax.numpy as jnp
from jax import lax
from jax.experimental import pallas as pl
from jax.experimental.pallas import tpu as pltpu


def _round_up(x, m):
    return ((x + m - 1) // m) * m


def label_attention_classifier(encoding, label_queries, label_weights, *,
                               block_n=None, matmul_dtype=jnp.bfloat16,
                               seq_splits=1, vmem_budget_bytes=28 << 20):
    """encoding: (N, H) f32; label_queries/label_weights: (H, L) f32 -> (1, L) f32."""
    n, h = encoding.shape
    h2, l = label_queries.shape
    assert h == h2 and label_weights.shape == (h, l)
    assert seq_splits >= 1

    lp = _round_up(l, 128)                             # lane-dense label axis
    itemsize = jnp.dtype(matmul_dtype).itemsize
    row_mult = max(8, 32 // itemsize)                  # 8 (f32) / 16 (bf16) rows

    # Fused q|w block (H, 2*Lp); padded label columns are zero.
    qw = jnp.concatenate(
        [jnp.pad(label_queries, ((0, 0), (0, lp - l))),
         jnp.pad(label_weights, ((0, 0), (0, lp - l)))],
        axis=1).astype(matmul_dtype)

    # ---- sequence tile sized by bytes (no row cap), against a v7x-safe budget ----
    resident = 2 * h * 2 * lp * itemsize               # double-buffered q|w block
    resident += (3 + 2 * 8) * lp * 4                   # m/d/s scratch + 2x out block
    per_row = 2 * h * itemsize + 4 * lp * 4            # 2x enc row + pw + exp temps
    if block_n is None:
        tn = max(row_mult, (vmem_budget_bytes - resident) // per_row)
    else:
        tn = max(row_mult, block_n)
    tn = max(row_mult, (tn // row_mult) * row_mult)
    tn = min(tn, _round_up(-(-n // seq_splits), row_mult))   # don't exceed per-split rows

    tiles_total = -(-n // tn)
    tiles_per_split = -(-tiles_total // seq_splits)
    tiles_total = tiles_per_split * seq_splits
    n_pad = tiles_total * tn
    mask_from = n // tn                                # first tile index with padded rows

    enc = encoding.astype(matmul_dtype)
    if n_pad != n:
        enc = jnp.pad(enc, ((0, n_pad - n), (0, 0)))

    def kernel(enc_ref, qw_ref, out_ref, m_sc, d_sc, s_sc):
        c = pl.program_id(0)                           # sequence split ("parallel")
        k = pl.program_id(1)                           # streamed tile ("arbitrary")

        @pl.when(k == 0)
        def _():
            m_sc[...] = jnp.full_like(m_sc, -1e30)
            d_sc[...] = jnp.zeros_like(d_sc)
            s_sc[...] = jnp.zeros_like(s_sc)

        # One fused MXU matmul: logits (enc@q) and values (enc@w) side by side.
        pw = jnp.dot(enc_ref[...], qw_ref[...],
                     preferred_element_type=jnp.float32)      # (tn, 2*lp) f32
        p = pw[:, :lp]                                        # logits  enc @ q
        v = pw[:, lp:]                                        # values  enc @ w

        def accumulate(p_logits):
            # Online softmax over the sequence axis, carried across grid steps.
            m_tile = jnp.max(p_logits, axis=0, keepdims=True)     # (1, lp)
            m_new = jnp.maximum(m_sc[...], m_tile)
            alpha = jnp.exp(m_sc[...] - m_new)                    # (1, lp)
            e = jnp.exp(p_logits - m_new)                         # (tn, lp)
            d_sc[...] = alpha * d_sc[...] + jnp.sum(e, axis=0, keepdims=True)
            s_sc[...] = alpha * s_sc[...] + jnp.sum(e * v, axis=0, keepdims=True)
            m_sc[...] = m_new

        if n_pad != n:   # static: only emit masking code when a padded tail exists
            tile_idx = c * tiles_per_split + k

            @pl.when(tile_idx >= mask_from)            # only tiles with padded rows
            def _():
                row = tile_idx * tn + lax.broadcasted_iota(jnp.int32, (tn, 1), 0)
                accumulate(jnp.where(row < n, p, jnp.float32(-1e30)))

            @pl.when(tile_idx < mask_from)             # clean tiles: no mask VPU work
            def _():
                accumulate(p)
        else:
            accumulate(p)

        @pl.when(k == pl.num_programs(1) - 1)
        def _():
            # Emit this split's partial online-softmax state as one unmasked
            # 8-sublane store: rows 0/1/2 = m, d, s; rows 3..7 zero padding.
            stats = jnp.concatenate(
                [m_sc[...], d_sc[...], s_sc[...],
                 jnp.zeros((5, lp), jnp.float32)], axis=0)        # (8, lp)
            out_ref[...] = stats[None]

    # VMEM accounting (enc double-buffered + pw + exp temps + resident q|w + scratch).
    footprint = (2 * tn * h * itemsize + tn * 2 * lp * 4 + 2 * tn * lp * 4
                 + resident)
    vmem_limit = int(min(max(footprint + (8 << 20), 32 << 20), 56 << 20))

    cost = pl.CostEstimate(
        flops=2 * n_pad * h * (2 * lp) + 8 * n_pad * lp,
        transcendentals=n_pad * lp,
        bytes_accessed=n_pad * h * itemsize + h * 2 * lp * itemsize
                       + seq_splits * 8 * lp * 4,
    )

    stats = pl.pallas_call(
        kernel,
        out_shape=jax.ShapeDtypeStruct((seq_splits, 8, lp), jnp.float32),
        grid_spec=pltpu.PrefetchScalarGridSpec(
            num_scalar_prefetch=0,
            grid=(seq_splits, tiles_per_split),
            in_specs=[
                # streamed enc tile (double-buffered by the pipeline)
                pl.BlockSpec((tn, h), lambda c, k: (c * tiles_per_split + k, 0)),
                # resident fused q|w block
                pl.BlockSpec((h, 2 * lp), lambda c, k: (0, 0)),
            ],
            out_specs=pl.BlockSpec((1, 8, lp), lambda c, k: (c, 0, 0)),
            scratch_shapes=[pltpu.VMEM((1, lp), jnp.float32)] * 3,   # m, denom, numer
        ),
        compiler_params=pltpu.CompilerParams(
            dimension_semantics=("parallel", "arbitrary"),   # splits ∥, seq = reduction
            vmem_limit_bytes=vmem_limit,
        ),
        cost_estimate=cost,
    )(enc, qw)

    # Combine the per-split partial online-softmax states (tiny f32 op).
    m = stats[:, 0, :]                                  # (S, lp)
    d = stats[:, 1, :]
    s = stats[:, 2, :]
    m_all = jnp.max(m, axis=0, keepdims=True)           # (1, lp)
    w = jnp.exp(m - m_all)                              # fully-padded splits -> 0
    denom = jnp.sum(w * d, axis=0, keepdims=True)
    numer = jnp.sum(w * s, axis=0, keepdims=True)
    score = numer / denom                               # (1, lp)
    return score[:, :l]


def reference(encoding, label_queries, label_weights):
    logits = encoding @ label_queries
    attn = jax.nn.softmax(logits, axis=0)
    attn_value = encoding.T @ attn
    score = jnp.sum(attn_value * label_weights, axis=0)
    return score[None, :]


if __name__ == "__main__":
    # Small, deterministic setup consistent with the module's __init__.
    hidden_size = 32
    num_labels = 16
    seq_len = 8

    key = jax.random.PRNGKey(0)
    k_enc, k_q, k_w = jax.random.split(key, 3)

    encoding = jax.random.normal(k_enc, (seq_len, hidden_size), dtype=jnp.float32)
    label_queries = 0.1 * jax.random.normal(k_q, (hidden_size, num_labels), dtype=jnp.float32)
    label_weights = 0.1 * jax.random.normal(k_w, (hidden_size, num_labels), dtype=jnp.float32)

    ref = reference(encoding, label_queries, label_weights)

    # Exact-precision path (f32 matmuls).
    out_f32 = jax.block_until_ready(
        label_attention_classifier(encoding, label_queries, label_weights,
                                   matmul_dtype=jnp.float32))
    assert out_f32.shape == (1, num_labels), out_f32.shape
    assert jnp.allclose(out_f32, ref, atol=1e-5, rtol=1e-5), (out_f32, ref)

    # Default fast path: bf16 MXU inputs, f32 softmax/accumulation.
    out_bf16 = jax.block_until_ready(
        label_attention_classifier(encoding, label_queries, label_weights))
    assert out_bf16.shape == (1, num_labels), out_bf16.shape
    assert jnp.allclose(out_bf16, ref, atol=5e-2, rtol=5e-2), (out_bf16, ref)

    # Multi-tile streaming + padded-row masking + 2-way sequence split
    # (the v7x dual-TensorCore path; on 1-TC chips the split just loops).
    k2_enc, k2_q, k2_w = jax.random.split(jax.random.PRNGKey(1), 3)
    enc2 = jax.random.normal(k2_enc, (300, 256), dtype=jnp.float32)
    q2 = 0.1 * jax.random.normal(k2_q, (256, 50), dtype=jnp.float32)
    w2 = 0.1 * jax.random.normal(k2_w, (256, 50), dtype=jnp.float32)
    ref2 = reference(enc2, q2, w2)
    out2 = jax.block_until_ready(
        label_attention_classifier(enc2, q2, w2, matmul_dtype=jnp.float32,
                                   block_n=64, seq_splits=2))
    assert out2.shape == (1, 50), out2.shape
    assert jnp.allclose(out2, ref2, atol=1e-4, rtol=1e-4), (out2, ref2)

    print("KERNEL_OK")
</pallas_src>

<mosaic_0001>
module attributes {stable_mosaic.version = 11 : i64} {
  func.func @kernel(%arg0: i32, %arg1: i32, %arg2: memref<8x32xf32, #tpu.memory_space<vmem>>, %arg3: memref<32x256xf32, #tpu.memory_space<vmem>>, %arg4: memref<1x8x128xf32, #tpu.memory_space<vmem>>, %arg5: memref<1x128xf32, #tpu.memory_space<vmem>>, %arg6: memref<1x128xf32, #tpu.memory_space<vmem>>, %arg7: memref<1x128xf32, #tpu.memory_space<vmem>>) attributes {dimension_semantics = [#tpu.dimension_semantics<parallel>, #tpu.dimension_semantics<arbitrary>], iteration_bounds = array<i64: 1, 1>, scalar_prefetch = 0 : i64, scratch_operands = 3 : i64, tpu.core_type = #tpu.core_type<tc>, window_params = [{transform_indices = @transform_0, window_bounds = array<i64: 8, 32>}, {pipeline_mode = #tpu.pipeline_mode<synchronous>, transform_indices = @transform_1, window_bounds = array<i64: 32, 256>}, {transform_indices = @transform_2, window_bounds = array<i64: 1, 8, 128>}]} {
    %c0_i32 = arith.constant 0 : i32
    %0 = arith.cmpi eq, %arg1, %c0_i32 : i32
    %1 = arith.extui %0 : i1 to i32
    %c0_i32_0 = arith.constant 0 : i32
    %2 = arith.cmpi ne, %1, %c0_i32_0 : i32
    scf.if %2 {
      %cst_23 = arith.constant -1.000000e+30 : f32
      %35 = vector.broadcast %cst_23 : f32 to vector<1x128xf32>
      %c0_24 = arith.constant 0 : index
      %c0_25 = arith.constant 0 : index
      %36 = vector.load %arg5[%c0_24, %c0_25] : memref<1x128xf32, #tpu.memory_space<vmem>>, vector<1x128xf32>
      tpu.vector_store %arg5[%c0_24, %c0_25], %35 {strides = array<i32>} : memref<1x128xf32, #tpu.memory_space<vmem>>, vector<1x128xf32>,
      %cst_26 = arith.constant 0.000000e+00 : f32
      %37 = vector.broadcast %cst_26 : f32 to vector<1x128xf32>
      %c0_27 = arith.constant 0 : index
      %c0_28 = arith.constant 0 : index
      %38 = vector.load %arg6[%c0_27, %c0_28] : memref<1x128xf32, #tpu.memory_space<vmem>>, vector<1x128xf32>
      tpu.vector_store %arg6[%c0_27, %c0_28], %37 {strides = array<i32>} : memref<1x128xf32, #tpu.memory_space<vmem>>, vector<1x128xf32>,
      %cst_29 = arith.constant 0.000000e+00 : f32
      %39 = vector.broadcast %cst_29 : f32 to vector<1x128xf32>
      %c0_30 = arith.constant 0 : index
      %c0_31 = arith.constant 0 : index
      %40 = vector.load %arg7[%c0_30, %c0_31] : memref<1x128xf32, #tpu.memory_space<vmem>>, vector<1x128xf32>
      tpu.vector_store %arg7[%c0_30, %c0_31], %39 {strides = array<i32>} : memref<1x128xf32, #tpu.memory_space<vmem>>, vector<1x128xf32>,
    } else {
    }
    %c0 = arith.constant 0 : index
    %c0_1 = arith.constant 0 : index
    %3 = vector.load %arg2[%c0, %c0_1] : memref<8x32xf32, #tpu.memory_space<vmem>>, vector<8x32xf32>
    %c0_2 = arith.constant 0 : index
    %c0_3 = arith.constant 0 : index
    %4 = vector.load %arg3[%c0_2, %c0_3] : memref<32x256xf32, #tpu.memory_space<vmem>>, vector<32x256xf32>
    %cst = arith.constant dense<0.000000e+00> : vector<8x256xf32>
    %5 = tpu.matmul %3, %4, %cst {dimension_numbers = #tpu.dot_dimension_numbers<[1], [0], [0], [1], [0, 0, 1, 1], [], []>} : vector<8x32xf32>, vector<32x256xf32>, vector<8x256xf32> -> vector<8x256xf32>
    %6 = vector.extract_strided_slice %5 {offsets = [0, 0], sizes = [8, 128], strides = [1, 1]} : vector<8x256xf32> to vector<8x128xf32>
    %7 = vector.extract_strided_slice %5 {offsets = [0, 128], sizes = [8, 128], strides = [1, 1]} : vector<8x256xf32> to vector<8x128xf32>
    %cst_4 = arith.constant dense<0xFF800000> : vector<128xf32>
    %8 = vector.multi_reduction <maximumf>, %6, %cst_4 [0] : vector<8x128xf32> to vector<128xf32>
    %9 = vector.shape_cast %8 : vector<128xf32> to vector<1x128xf32>
    %c0_5 = arith.constant 0 : index
    %c0_6 = arith.constant 0 : index
    %10 = vector.load %arg5[%c0_5, %c0_6] : memref<1x128xf32, #tpu.memory_space<vmem>>, vector<1x128xf32>
    %11 = arith.maximumf %10, %9 : vector<1x128xf32>
    %c0_7 = arith.constant 0 : index
    %c0_8 = arith.constant 0 : index
    %12 = vector.load %arg5[%c0_7, %c0_8] : memref<1x128xf32, #tpu.memory_space<vmem>>, vector<1x128xf32>
    %13 = arith.subf %12, %11 : vector<1x128xf32>
    %14 = math.exp %13 : vector<1x128xf32>
    %15 = vector.broadcast %11 : vector<1x128xf32> to vector<8x128xf32>
    %16 = arith.subf %6, %15 : vector<8x128xf32>
    %17 = math.exp %16 : vector<8x128xf32>
    %c0_9 = arith.constant 0 : index
    %c0_10 = arith.constant 0 : index
    %18 = vector.load %arg6[%c0_9, %c0_10] : memref<1x128xf32, #tpu.memory_space<vmem>>, vector<1x128xf32>
    %19 = arith.mulf %14, %18 : vector<1x128xf32>
    %cst_11 = arith.constant dense<0.000000e+00> : vector<128xf32>
    %20 = vector.multi_reduction <add>, %17, %cst_11 [0] : vector<8x128xf32> to vector<128xf32>
    %21 = vector.shape_cast %20 : vector<128xf32> to vector<1x128xf32>
    %22 = arith.addf %19, %21 : vector<1x128xf32>
    %c0_12 = arith.constant 0 : index
    %c0_13 = arith.constant 0 : index
    %23 = vector.load %arg6[%c0_12, %c0_13] : memref<1x128xf32, #tpu.memory_space<vmem>>, vector<1x128xf32>
    tpu.vector_store %arg6[%c0_12, %c0_13], %22 {strides = array<i32>} : memref<1x128xf32, #tpu.memory_space<vmem>>, vector<1x128xf32>,
    %c0_14 = arith.constant 0 : index
    %c0_15 = arith.constant 0 : index
    %24 = vector.load %arg7[%c0_14, %c0_15] : memref<1x128xf32, #tpu.memory_space<vmem>>, vector<1x128xf32>
    %25 = arith.mulf %14, %24 : vector<1x128xf32>
    %26 = arith.mulf %17, %7 : vector<8x128xf32>
    %cst_16 = arith.constant dense<0.000000e+00> : vector<128xf32>
    %27 = vector.multi_reduction <add>, %26, %cst_16 [0] : vector<8x128xf32> to vector<128xf32>
    %28 = vector.shape_cast %27 : vector<128xf32> to vector<1x128xf32>
    %29 = arith.addf %25, %28 : vector<1x128xf32>
    %c0_17 = arith.constant 0 : index
    %c0_18 = arith.constant 0 : index
    %30 = vector.load %arg7[%c0_17, %c0_18] : memref<1x128xf32, #tpu.memory_space<vmem>>, vector<1x128xf32>
    tpu.vector_store %arg7[%c0_17, %c0_18], %29 {strides = array<i32>} : memref<1x128xf32, #tpu.memory_space<vmem>>, vector<1x128xf32>,
    %c0_19 = arith.constant 0 : index
    %c0_20 = arith.constant 0 : index
    %31 = vector.load %arg5[%c0_19, %c0_20] : memref<1x128xf32, #tpu.memory_space<vmem>>, vector<1x128xf32>
    tpu.vector_store %arg5[%c0_19, %c0_20], %11 {strides = array<i32>} : memref<1x128xf32, #tpu.memory_space<vmem>>, vector<1x128xf32>,
    %c0_i32_21 = arith.constant 0 : i32
    %32 = arith.cmpi eq, %arg1, %c0_i32_21 : i32
    %33 = arith.extui %32 : i1 to i32
    %c0_i32_22 = arith.constant 0 : i32
    %34 = arith.cmpi ne, %33, %c0_i32_22 : i32
    scf.if %34 {
      %c0_23 = arith.constant 0 : index
      %c0_24 = arith.constant 0 : index
      %35 = vector.load %arg5[%c0_23, %c0_24] : memref<1x128xf32, #tpu.memory_space<vmem>>, vector<1x128xf32>
      %c0_25 = arith.constant 0 : index
      %c0_26 = arith.constant 0 : index
      %36 = vector.load %arg6[%c0_25, %c0_26] : memref<1x128xf32, #tpu.memory_space<vmem>>, vector<1x128xf32>
      %c0_27 = arith.constant 0 : index
      %c0_28 = arith.constant 0 : index
      %37 = vector.load %arg7[%c0_27, %c0_28] : memref<1x128xf32, #tpu.memory_space<vmem>>, vector<1x128xf32>
      %cst_29 = arith.constant 0.000000e+00 : f32
      %38 = vector.broadcast %cst_29 : f32 to vector<5x128xf32>
      %39 = tpu.concatenate %35, %36, %37, %38 in 0 : vector<1x128xf32>, vector<1x128xf32>, vector<1x128xf32>, vector<5x128xf32> -> vector<8x128xf32>
      %40 = vector.shape_cast %39 : vector<8x128xf32> to vector<1x8x128xf32>
      %c0_30 = arith.constant 0 : index
      %c0_31 = arith.constant 0 : index
      %c0_32 = arith.constant 0 : index
      %41 = vector.load %arg4[%c0_30, %c0_31, %c0_32] : memref<1x8x128xf32, #tpu.memory_space<vmem>>, vector<1x8x128xf32>
      tpu.vector_store %arg4[%c0_30, %c0_31, %c0_32], %40 {strides = array<i32>} : memref<1x8x128xf32, #tpu.memory_space<vmem>>, vector<1x8x128xf32>,
    } else {
    }
    return
  }
  func.func @transform_0(%arg0: i32, %arg1: i32) -> (i32, i32) {
    %c1_i32 = arith.constant 1 : i32
    %0 = arith.muli %arg0, %c1_i32 : i32
    %1 = arith.addi %0, %arg1 : i32
    %c0_i32 = arith.constant 0 : i32
    %c0_i32_0 = arith.constant 0 : i32
    return %1, %c0_i32 : i32, i32
  }
  func.func @transform_1(%arg0: i32, %arg1: i32) -> (i32, i32) {
    %c0_i32 = arith.constant 0 : i32
    %c0_i32_0 = arith.constant 0 : i32
    %c0_i32_1 = arith.constant 0 : i32
    return %c0_i32, %c0_i32_0 : i32, i32
  }
  func.func @transform_2(%arg0: i32, %arg1: i32) -> (i32, i32, i32) {
    %c0_i32 = arith.constant 0 : i32
    %c0_i32_0 = arith.constant 0 : i32
    %c0_i32_1 = arith.constant 0 : i32
    return %arg0, %c0_i32, %c0_i32_0 : i32, i32, i32
  }
}

</mosaic_0001>

<llo_original>
// kernel: tpu_custom_call.1
$region0: #{tpu_custom_call.1}
  #allocation0 [shape = 'u32[]', space=smem, size = 0x4, offset = 0x4, fixed_abs, tag = 'smem constant byte address 0x4 - core index']
  #allocation1 [shape = 'u32[144,128]{1,0:T(1,128)}', space=vmem, size = 0x12000, scoped, tag = 'internal scratch']
  #allocation2 [shape = 'f32[1,128]{1,0:T(1,128)}', space=vmem, size = 0x200, scoped, tag = 'scratch operand']
  #allocation3 [shape = 'f32[1,128]{1,0:T(1,128)}', space=vmem, size = 0x200, scoped, tag = 'scratch operand']
  #allocation4 [shape = 'f32[1,128]{1,0:T(1,128)}', space=vmem, size = 0x200, scoped, tag = 'scratch operand']
  %s0 = inlined_call_operand.hbm [shape: f32[8,32], index: 0, kind: input, shape index: {}]
  %s1 = inlined_call_operand.hbm [shape: f32[32,256], index: 1, kind: input, shape index: {}]
  %s2 = inlined_call_operand.hbm [shape: f32[1,8,128], index: 2, kind: output, shape index: {}]
  %s3 = sld [smem:[#allocation0]]
  $region34: #{tpu_custom_call.1} parent=0
    _
  %s5 = ssub.s32 1, %s3
  %s6 = scalar_select 0, %s5, %s3
  $region1: #{tpu_custom_call.1} parent=0
    #allocation5 [shape = 'u8[4096]{0}', space=vmem, size = 0x1000, scoped, tag = 'input window, operand 0, single buffered']
    #allocation6 [shape = 's32[1]{0}', space=sflag, size = 0x4, scoped, tag = 'scoped memory for tpu_custom_call.1']
    #allocation7 [shape = 's32[1]{0}', space=sflag, size = 0x4, scoped, tag = 'scoped memory for tpu_custom_call.1']
    #allocation8 [shape = 'u8[32768]{0}', space=vmem, size = 0x8000, scoped, tag = 'input window, operand 1, single buffered']
    #allocation9 [shape = 's32[1]{0}', space=sflag, size = 0x4, scoped, tag = 'scoped memory for tpu_custom_call.1']
    #allocation10 [shape = 'u8[4096]{0}', space=vmem, size = 0x1000, scoped, tag = 'output window, operand 0, single buffered']
    %7 = vsyncpa [#allocation6], 0
    %8 = vsyncpa [#allocation9], 0
    %9 = vsyncpa [#allocation7], 0
    // Predicated region
    $region2: #{tpu_custom_call.1} parent=1 // pred_check
      _
    $region3: #{tpu_custom_call.1} parent=1 // pred_check_branch
      %11 = sbr.rel (0) target = $region5
    $region4: #{tpu_custom_call.1} parent=1 // pred_region
      %s12 = sadd.s32 0, 0
      %s14 = ssub.s32 128, 128
      %15 = vsyncadd [#allocation6], %s14
      %s16 = smul.addr %s12, 128
      %s17 = scalar_lea.hbm %s0, %s16
      %s19 = sshll.u32 [#allocation5], 4
      %s20 = int_to_ptr.vmem [resolvable:$true] %s19
      %22 = dma.hbm_to_vmem [thread:$0]  %s17, 128, %s20, [#allocation6]
    $region5: #{tpu_custom_call.1} parent=1 // pred_fallthru
      _
    // Predicated region
    $region6: #{tpu_custom_call.1} parent=1 // pred_check
      _
    $region7: #{tpu_custom_call.1} parent=1 // pred_check_branch
      %24 = sbr.rel (0) target = $region9
    $region8: #{tpu_custom_call.1} parent=1 // pred_region
      %s26 = ssub.s32 1024, 1024
      %27 = vsyncadd [#allocation9], %s26
      %s28 = sshll.u32 [#allocation8], 4
      %s29 = int_to_ptr.vmem [resolvable:$true] %s28
      %34 = dma.hbm_to_vmem [thread:$0]  %s1, 1024, %s29, [#allocation9], 256, 256, 16
    $region9: #{tpu_custom_call.1} parent=1 // pred_fallthru
      _
    // Predicated region
    $region10: #{tpu_custom_call.1} parent=1 // pred_check
      _
    $region11: #{tpu_custom_call.1} parent=1 // pred_check_branch
      %36 = sbr.rel (0) target = $region13
    $region12: #{tpu_custom_call.1} parent=1 // pred_region
      %37 = dma.done [#allocation6], 128
    $region13: #{tpu_custom_call.1} parent=1 // pred_fallthru
      _
    // Predicated region
    $region14: #{tpu_custom_call.1} parent=1 // pred_check
      _
    $region15: #{tpu_custom_call.1} parent=1 // pred_check_branch
      %39 = sbr.rel (0) target = $region17
    $region16: #{tpu_custom_call.1} parent=1 // pred_region
      %40 = dma.done [#allocation9], 1024
    $region17: #{tpu_custom_call.1} parent=1 // pred_fallthru
      _
    %s41 = sadd.s32 0, 0
    %p42 = scmp.eq.s32.totalorder 0, 0
    // Predicated region
    $region18: #{tpu_custom_call.1} parent=1 // pred_check
      %p43 = pneg %p42
    $region19: #{tpu_custom_call.1} parent=1 // pred_check_branch
      %45 = sbr.rel (%p43) target = $region21
    $region20: #{tpu_custom_call.1} parent=1 // pred_region
      %46 = vst [vmem:[#allocation2] sm:$0x1] -1e+30
      %47 = vst [vmem:[#allocation3] sm:$0x1] 0.0
      %48 = vst [vmem:[#allocation4] sm:$0x1] 0.0
    $region21: #{tpu_custom_call.1} parent=1 // pred_fallthru
      _
    %v49 = vld [vmem:[#allocation5] sm:$0xff]
    %v50 = vld [vmem:[#allocation8] sm:$0xff]
    %v51 = vld [vmem:[#allocation8 + $0x8] sm:$0xff]
    %v52 = vld [vmem:[#allocation8 + $0x10] sm:$0xff]
    %v53 = vld [vmem:[#allocation8 + $0x18] sm:$0xff]
    %v54 = vld [vmem:[#allocation8 + $0x20] sm:$0xff]
    %v55 = vld [vmem:[#allocation8 + $0x28] sm:$0xff]
    %v56 = vld [vmem:[#allocation8 + $0x30] sm:$0xff]
    %v57 = vld [vmem:[#allocation8 + $0x38] sm:$0xff]
    %vm58 = vcmask 261120
    %v60 = vsel %vm58, %v49, 0
    %62 = vmatprep.subr.mxu0 %v51
    %63 = vmatpush1.msra.mxu0 %v50
    %64 = vmatprep.subr.mxu0 %v53
    %65 = vmatpush1.msra.mxu0 %v52
    %66 = vmatprep.subr.mxu0 %v55
    %67 = vmatpush1.msra.mxu0 %v54
    %68 = vmatprep.subr.mxu0 %v57
    %69 = vmatpush1.msra.mxu0 %v56
    %70 = vmatprep.subr.mxu0 0.0
    %71 = vmatpush1.msra.mxu0 0.0
    %72 = vmatprep.subr.mxu0 0.0
    %73 = vmatpush1.msra.mxu0 0.0
    %74 = vmatprep.subr.mxu0 0.0
    %75 = vmatpush1.msra.mxu0 0.0
    %76 = vmatprep.subr.mxu0 0.0
    %77 = vmatpush1.msra.mxu0 0.0
    %78 = vmatprep.subr.mxu0 0.0
    %79 = vmatpush1.msra.mxu0 0.0
    %80 = vmatprep.subr.mxu0 0.0
    %81 = vmatpush1.msra.mxu0 0.0
    %82 = vmatprep.subr.mxu0 0.0
    %83 = vmatpush1.msra.mxu0 0.0
    %84 = vmatprep.subr.mxu0 0.0
    %85 = vmatpush1.msra.mxu0 0.0
    %86 = vmatprep.subr.mxu0 0.0
    %87 = vmatpush1.msra.mxu0 0.0
    %88 = vmatprep.subr.mxu0 0.0
    %89 = vmatpush1.msra.mxu0 0.0
    %90 = vmatprep.subr.mxu0 0.0
    %91 = vmatpush1.msra.mxu0 0.0
    %92 = vmatprep.subr.mxu0 0.0
    %93 = vmatpush1.msra.mxu0 0.0
    %94 = vmatprep.subr.mxu0 0.0
    %95 = vmatpush1.msra.mxu0 0.0
    %96 = vmatprep.subr.mxu0 0.0
    %97 = vmatpush1.msra.mxu0 0.0
    %98 = vmatprep.subr.mxu0 0.0
    %99 = vmatpush1.msra.mxu0 0.0
    %100 = vmatprep.subr.mxu0 0.0
    %101 = vmatpush1.msra.mxu0 0.0
    %102 = vmatprep.subr.mxu0 0.0
    %103 = vmatpush1.msra.mxu0 0.0
    %104 = vmatprep.subr.mxu0 0.0
    %105 = vmatpush1.msra.mxu0 0.0
    %106 = vmatprep.subr.mxu0 0.0
    %107 = vmatpush1.msra.mxu0 0.0
    %108 = vmatprep.subr.mxu0 0.0
    %109 = vmatpush1.msra.mxu0 0.0
    %110 = vmatprep.subr.mxu0 0.0
    %111 = vmatpush1.msra.mxu0 0.0
    %112 = vmatprep.subr.mxu0 0.0
    %113 = vmatpush1.msra.mxu0 0.0
    %114 = vmatprep.subr.mxu0 0.0
    %115 = vmatpush1.msra.mxu0 0.0
    %116 = vmatprep.subr.mxu0 0.0
    %117 = vmatpush1.msra.mxu0 0.0
    %118 = vmatprep.subr.mxu0 0.0
    %119 = vmatpush1.msra.mxu0 0.0
    %120 = vmatprep.subr.mxu0 0.0
    %121 = vmatpush1.msra.mxu0 0.0
    %122 = vmatprep.subr.mxu0 0.0
    %123 = vmatpush1.msra.mxu0 0.0
    %124 = vmatprep.subr.mxu0 0.0
    %125 = vmatpush1.msra.mxu0 0.0
    %126 = vmatprep.mubr.f32.mxu0 0.0
    %127 = vmatmul.mubr.f32.gmra.mrb[0].mxu0 %v60
    %v128 = vpop.f32.mrb[0].mxu0
    %v129 = vadd.f32 0.0, %v128
    %v130 = vpop.f32.mrb[0].mxu0
    %v131 = vadd.f32 0.0, %v130
    %132 = vdwg.mxu0
    %v133 = vrot.slane %v129, 4
    %v134 = vmax.f32 %v129, %v133
    %v135 = vrot.slane %v134, 2
    %v136 = vmax.f32 %v134, %v135
    %v137 = vrot.slane %v136, 1
    %v138 = vmax.f32 %v136, %v137
    %v139 = vld [vmem:[#allocation2] sm:$0x1]
    %v140 = vmax.f32 %v139, %v138
    %v141 = vsub.f32 %v139, %v140
    %v142 = vmul.f32 %v141, 1.442695
    %v143 = vpow.pop %v142
    %v145 = vlaneseq
    %v146 = vshrl.u32 %v145, 7
    %v147 = vsub.s32 0, %v146
    %v148 = vrot.slane %v140, %v147
    %v150 = vsub.f32 %v129, %v148
    %v151 = vmul.f32 %v150, 1.442695
    %v152 = vpow.pop %v151
    %v153 = vld [vmem:[#allocation3] sm:$0x1]
    %v154 = vmul.f32 %v143, %v153
    %v155 = vrot.slane %v152, 4
    %v156 = vadd.f32 %v152, %v155
    %v157 = vrot.slane %v156, 2
    %v158 = vadd.f32 %v156, %v157
    %v159 = vrot.slane %v158, 1
    %v160 = vadd.f32 %v158, %v159
    %v161 = vadd.f32 %v154, %v160
    %162 = vst [vmem:[#allocation3] sm:$0x1] %v161
    %v163 = vld [vmem:[#allocation4] sm:$0x1]
    %v164 = vmul.f32 %v143, %v163
    %v165 = vmul.f32 %v152, %v131
    %v166 = vrot.slane %v165, 4
    %v167 = vadd.f32 %v165, %v166
    %v168 = vrot.slane %v167, 2
    %v169 = vadd.f32 %v167, %v168
    %v170 = vrot.slane %v169, 1
    %v171 = vadd.f32 %v169, %v170
    %v172 = vadd.f32 %v164, %v171
    %173 = vst [vmem:[#allocation4] sm:$0x1] %v172
    %174 = vst [vmem:[#allocation2] sm:$0x1] %v140
    // Predicated region
    $region22: #{tpu_custom_call.1} parent=1 // pred_check
      %p175 = pneg %p42
    $region23: #{tpu_custom_call.1} parent=1 // pred_check_branch
      %177 = sbr.rel (%p175) target = $region25
    $region24: #{tpu_custom_call.1} parent=1 // pred_region
      %v178 = vld [vmem:[#allocation2] sm:$0x1]
      %v179 = vld [vmem:[#allocation3] sm:$0x1]
      %v180 = vld [vmem:[#allocation4] sm:$0x1]
      %v182 = vlaneseq
      %v183 = vshrl.u32 %v182, 7
      %v184 = vsub.s32 0, %v183
      %v185 = vrot.slane %v179, %v184
      %v188 = vlaneseq
      %v189 = vshrl.u32 %v188, 7
      %v190 = vsub.s32 0, %v189
      %v191 = vrot.slane %v180, %v190
      %vm193 = vcmask 1040384
      %v194 = vsel %vm193, %v178, %v185
      %vm195 = vcmask 1041408
      %v196 = vsel %vm195, %v194, %v191
      %vm197 = vcmask 1042432
      %v198 = vsel %vm197, %v196, 0.0
      %199 = vst [vmem:[#allocation10] sm:$0xff] %v198
    $region25: #{tpu_custom_call.1} parent=1 // pred_fallthru
      _
    // Predicated region
    $region26: #{tpu_custom_call.1} parent=1 // pred_check
      _
    $region27: #{tpu_custom_call.1} parent=1 // pred_check_branch
      %201 = sbr.rel (0) target = $region29
    $region28: #{tpu_custom_call.1} parent=1 // pred_region
      %s203 = ssub.s32 128, 128
      %204 = vsyncadd [#allocation7], %s203
      %s206 = sshll.u32 [#allocation10], 4
      %s207 = int_to_ptr.vmem [resolvable:$true] %s206
      %209 = dma.vmem_to_hbm [thread:$0]  %s207, 128, %s2, [#allocation7]
    $region29: #{tpu_custom_call.1} parent=1 // pred_fallthru
      _
    // Predicated region
    $region30: #{tpu_custom_call.1} parent=1 // pred_check
      _
    $region31: #{tpu_custom_call.1} parent=1 // pred_check_branch
      %211 = sbr.rel (0) target = $region33
    $region32: #{tpu_custom_call.1} parent=1 // pred_region
      %212 = dma.done [#allocation7], 128
    $region33: #{tpu_custom_call.1} parent=1 // pred_fallthru
      _
    %213 = vsyncpa [#allocation6], 1
    %214 = vsyncpa [#allocation9], 1
    %215 = vsyncpa [#allocation7], 1

</llo_original>
